<compile_context>
chip_gen: v5e
topology: v5e:2x2
jax: 0.10.0
libtpu: 0.0.40
codegen_flags: <defaults>
</compile_context>

<pallas_src>
import functools

import jax
import jax.numpy as jnp
from jax.experimental import pallas as pl
from jax.experimental.pallas import tpu as pltpu

NEG_SLOPE = 0.01   # nn.LeakyReLU default
BN_EPS = 1e-5      # nn.BatchNorm1d default
LANE = 128


def _round_up(n, m):
    return ((n + m - 1) // m) * m


def _leaky(v):
    return jnp.where(v >= 0, v, NEG_SLOPE * v)


def _vmem_capacity_bytes():
    """Generation-aware VMEM capacity (falls back to v7x-safe 64 MiB)."""
    try:
        info = pltpu.get_tpu_info()
        cap = getattr(info, "vmem_capacity_bytes", None)
        if cap:
            return int(cap)
    except Exception:
        pass
    return 64 << 20


def _pad_lanes(x, pad_dim, in_dim):
    """Pad the feature (lane) axis with zeros up to pad_dim, in-kernel."""
    if in_dim == pad_dim:
        return x
    return jnp.concatenate(
        [x, jnp.zeros((x.shape[0], pad_dim - in_dim), x.dtype)], axis=-1)


# ---------------------------------------------------------------------------
# Fused forward on packed / padded parameters.  Used both inside the kernels
# (get_w returns a streamed/resident VMEM tile) and as a pure-JAX reference
# (get_w indexes the slab array), so the kernel math is testable bit-for-bit
# outside Pallas.
# ---------------------------------------------------------------------------
def _fused_forward(x, get_w, vecs, *, n_enc, compute_dtype):
    batch = x.shape[0]
    inv_n = 1.0 / batch

    def dot(a, mat_idx):
        return jnp.dot(a.astype(compute_dtype), get_w(mat_idx),
                       preferred_element_type=jnp.float32)

    def bn(y):
        # training-mode BN, gamma=1 / beta=0 (elided).  Centered two-pass
        # variance (matches the faithful PyTorch formula; no cancellation).
        # NOTE: at large batch the two sublane reductions can be moved to the
        # MXU (dot with a ones row) if the XLU becomes the hot slot.
        mean = jnp.sum(y, axis=0, keepdims=True) * inv_n
        d = y - mean
        var = jnp.sum(d * d, axis=0, keepdims=True) * inv_n
        return d * jax.lax.rsqrt(var + BN_EPS)

    def bias(vec_idx):
        # (1, P) row, broadcast on add.  (A stride-0 sublane-broadcast read is
        # a possible XLU micro-opt; negligible at these sizes.)
        return vecs[vec_idx:vec_idx + 1, :]

    mi = 0  # matrix index into the weight slab
    vi = 0  # vector index into V_all

    # input layer
    feat = dot(x, mi) + bias(vi)
    mi += 1
    vi += 1
    book = [feat]

    # encoder: LeakyReLU -> Linear -> BN -> LeakyReLU -> Linear -> BN
    for _ in range(n_enc):
        h = _leaky(feat)
        h = bn(dot(h, mi)); mi += 1          # bias elided: cancelled by BN mean-sub
        h = _leaky(h)
        h = bn(dot(h, mi)); mi += 1          # bias elided
        book.append(h)
        feat = h

    book = book[::-1]

    # decoder: LeakyReLU -> Linear -> LeakyReLU -> Linear -> BN, + skip, LeakyReLU
    for idx in range(n_enc):
        h = _leaky(feat)
        h = dot(h, mi) + bias(vi); mi += 1; vi += 1   # no BN after -> keep bias
        h = _leaky(h)
        h = bn(dot(h, mi)); mi += 1                   # bias elided
        feat = _leaky(h + book[idx + 1])

    # output layer
    return dot(feat, mi) + bias(vi)


# ---------------------------------------------------------------------------
# Kernel variants.
# ---------------------------------------------------------------------------
def _make_resident_kernel(n_enc, in_dim, compute_dtype):
    """Whole (small) weight slab resident in VMEM."""
    def kernel(x_ref, v_ref, w_ref, out_ref):
        x = _pad_lanes(x_ref[...].astype(jnp.float32), out_ref.shape[1], in_dim)
        out = _fused_forward(x, lambda i: w_ref[i], v_ref[...],
                             n_enc=n_enc, compute_dtype=compute_dtype)
        out_ref[...] = out.astype(out_ref.dtype)
    return kernel


def _make_streaming_kernel(n_enc, n_mats, in_dim, compute_dtype):
    """Weights stay in HBM; per-matrix DMA double buffer, prefetch depth 2."""
    def kernel(x_ref, v_ref, w_hbm, out_ref, w_buf, w_sem):
        def copy(mi, slot):
            return pltpu.make_async_copy(w_hbm.at[mi], w_buf.at[slot],
                                         w_sem.at[slot])

        copy(0, 0).start()                      # prime the pipeline

        def get_w(mi):
            slot = mi % 2
            copy(mi, slot).wait()
            if mi + 1 < n_mats:                 # prefetch next layer's weights
                copy(mi + 1, (mi + 1) % 2).start()
            return w_buf[slot]

        x = _pad_lanes(x_ref[...].astype(jnp.float32), out_ref.shape[1], in_dim)
        out = _fused_forward(x, get_w, v_ref[...],
                             n_enc=n_enc, compute_dtype=compute_dtype)
        out_ref[...] = out.astype(out_ref.dtype)
    return kernel


# ---------------------------------------------------------------------------
# Wrapper.
# ---------------------------------------------------------------------------
def latent_residual_mlp(x, w_stack, v_stack, *, n_enc, output_dim,
                        compute_dtype=jnp.bfloat16, stream_weights=None):
    """x: (batch, input_dim) f32. Returns (batch, output_dim) f32."""
    batch, in_dim = x.shape
    n_mats, P, _ = w_stack.shape
    assert P % LANE == 0

    # --- VMEM footprint accounting (static shapes -> Python ints) -----------
    capacity = _vmem_capacity_bytes()
    itemsize_w = jnp.dtype(compute_dtype).itemsize
    b_rows = _round_up(batch, 8)
    bytes_w_full = n_mats * P * P * itemsize_w           # fully-resident slab
    bytes_w_buf = 2 * P * P * itemsize_w                 # streaming double buffer
    bytes_v = v_stack.shape[0] * P * 4
    bytes_x = b_rows * _round_up(in_dim, LANE) * 4
    bytes_out = b_rows * P * 4
    bytes_act = (n_enc + 4) * b_rows * P * 4              # skip book + working tiles

    if stream_weights is None:
        # Stream unless the whole slab is comfortably small.
        stream_weights = bytes_w_full > capacity // 4

    bytes_w = bytes_w_buf if stream_weights else bytes_w_full
    resident = bytes_x + bytes_out + bytes_v + bytes_w + bytes_act
    reserve = 8 << 20                                      # compiler scratch headroom
    assert resident + reserve <= capacity, (
        f"working set {resident} B (+{reserve} B reserve) exceeds VMEM capacity "
        f"{capacity} B; shrink the batch (weights already stream from HBM).")
    vmem_limit = int(min(max(resident + reserve, 32 << 20), capacity))

    vmem = pl.BlockSpec(memory_space=pltpu.MemorySpace.VMEM)
    cparams = pltpu.CompilerParams(vmem_limit_bytes=vmem_limit)

    if stream_weights:
        out_pad = pl.pallas_call(
            _make_streaming_kernel(n_enc, n_mats, in_dim, compute_dtype),
            out_shape=jax.ShapeDtypeStruct((batch, P), jnp.float32),
            in_specs=[vmem, vmem, pl.BlockSpec(memory_space=pl.ANY)],
            out_specs=vmem,
            scratch_shapes=[pltpu.VMEM((2, P, P), compute_dtype),
                            pltpu.SemaphoreType.DMA((2,))],
            compiler_params=cparams,
        )(x, v_stack, w_stack)
    else:
        out_pad = pl.pallas_call(
            _make_resident_kernel(n_enc, in_dim, compute_dtype),
            out_shape=jax.ShapeDtypeStruct((batch, P), jnp.float32),
            in_specs=[vmem, vmem, vmem],
            out_specs=vmem,
            compiler_params=cparams,
        )(x, v_stack, w_stack)

    # Lane-dense padded output; slice back to the logical width outside.
    return out_pad[:, :output_dim]


# ---------------------------------------------------------------------------
# Parameter packing: flat PyTorch-style param list -> two padded slabs.
#   W_all : (n_mats, P, P)  zero-padded weights (y = x @ W layout), compute_dtype
#   V_all : (n_vecs, P)     surviving biases, f32
# ---------------------------------------------------------------------------
def pack_params(params_flat, *, n_enc, pad_dim, compute_dtype=jnp.bfloat16):
    it = iter(params_flat)
    nxt = lambda: next(it)
    mats, vecs = [], []

    def pad_mat(w):
        return (jnp.zeros((pad_dim, pad_dim), compute_dtype)
                .at[:w.shape[0], :w.shape[1]].set(w.astype(compute_dtype)))

    def pad_vec(b):
        b = b.reshape(-1).astype(jnp.float32)
        return jnp.zeros((pad_dim,), jnp.float32).at[:b.shape[0]].set(b)

    def check_bn_default(g, be):
        # init_weights() is a no-op -> BN affine params are PyTorch defaults
        # (gamma=1, beta=0), which the kernel elides.  Check defensively.
        if not (bool(jnp.all(g == 1.0)) and bool(jnp.all(be == 0.0))):
            raise ValueError("non-default BatchNorm gamma/beta: kernel elides "
                             "them; fold them back in before packing.")

    # input
    w, b = nxt(), nxt()
    mats.append(pad_mat(w)); vecs.append(pad_vec(b))
    # encoder layers: keep w1, w2 only (b1/b2 cancelled by BN; gamma/beta default)
    for _ in range(n_enc):
        w1, _b1, g1, be1, w2, _b2, g2, be2 = (nxt() for _ in range(8))
        check_bn_default(g1, be1); check_bn_default(g2, be2)
        mats += [pad_mat(w1), pad_mat(w2)]
    # decoder layers: keep w1, b1, w2 (b2 cancelled by BN; gamma/beta default)
    for _ in range(n_enc):
        w1, b1, w2, _b2, g, be = (nxt() for _ in range(6))
        check_bn_default(g, be)
        mats += [pad_mat(w1), pad_mat(w2)]
        vecs.append(pad_vec(b1))
    # output
    w, b = nxt(), nxt()
    mats.append(pad_mat(w)); vecs.append(pad_vec(b))

    w_stack = jnp.stack(mats)                                   # (n_mats, P, P)
    n_vec_rows = _round_up(len(vecs), 8)
    v_stack = (jnp.zeros((n_vec_rows, pad_dim), jnp.float32)
               .at[:len(vecs)].set(jnp.stack(vecs)))            # (n_vecs, P)
    return w_stack, v_stack


# ---------------------------------------------------------------------------
# Faithful (PyTorch-equivalent) reference: biases, gamma/beta, two-pass
# variance, f32 everywhere.  Proves the in-kernel elisions are exact.
# ---------------------------------------------------------------------------
def _faithful_forward(x, params_flat, n_enc):
    it = iter(params_flat)
    nxt = lambda: next(it)

    def linear(a, w, b):
        return jnp.dot(a, w, preferred_element_type=jnp.float32) + b

    def bn(a, g, be):
        mean = jnp.mean(a, axis=0, keepdims=True)
        var = jnp.mean((a - mean) ** 2, axis=0, keepdims=True)
        return (a - mean) * jax.lax.rsqrt(var + BN_EPS) * g + be

    w, b = nxt(), nxt()
    feat = linear(x, w, b)
    book = [feat]
    for _ in range(n_enc):
        w1, b1, g1, be1, w2, b2, g2, be2 = (nxt() for _ in range(8))
        h = _leaky(feat)
        h = bn(linear(h, w1, b1), g1, be1)
        h = _leaky(h)
        h = bn(linear(h, w2, b2), g2, be2)
        book.append(h)
        feat = h
    book = book[::-1]
    for i in range(n_enc):
        w1, b1, w2, b2, g, be = (nxt() for _ in range(6))
        h = _leaky(feat)
        h = linear(h, w1, b1)
        h = _leaky(h)
        h = bn(linear(h, w2, b2), g, be)
        feat = _leaky(h + book[i + 1])
    wo, bo = nxt(), nxt()
    return linear(feat, wo, bo)


# ---------------------------------------------------------------------------
# Deterministic parameter init mirroring PyTorch defaults (U(-1/sqrt(fan_in),·)
# for Linear, gamma=1 / beta=0 for BatchNorm1d).
# ---------------------------------------------------------------------------
def init_params(key, input_dim, output_dim, enc_dims):
    def lin(k, din, dout):
        k1, k2 = jax.random.split(k)
        bound = 1.0 / (din ** 0.5)
        w = jax.random.uniform(k1, (din, dout), jnp.float32, -bound, bound)
        b = jax.random.uniform(k2, (1, dout), jnp.float32, -bound, bound)
        return w, b

    n_enc = len(enc_dims) - 1
    keys = iter(jax.random.split(key, 4 + 4 * n_enc))
    params = []

    w, b = lin(next(keys), input_dim, enc_dims[0])
    params += [w, b]

    for din, dout in zip(enc_dims[:-1], enc_dims[1:]):
        w1, b1 = lin(next(keys), din, dout * 2)
        g1, be1 = jnp.ones((1, dout * 2), jnp.float32), jnp.zeros((1, dout * 2), jnp.float32)
        w2, b2 = lin(next(keys), dout * 2, dout)
        g2, be2 = jnp.ones((1, dout), jnp.float32), jnp.zeros((1, dout), jnp.float32)
        params += [w1, b1, g1, be1, w2, b2, g2, be2]

    rev = enc_dims[::-1]
    for din, dout in zip(rev[:-1], rev[1:]):
        w1, b1 = lin(next(keys), din, din * 2)
        w2, b2 = lin(next(keys), din * 2, dout)
        g, be = jnp.ones((1, dout), jnp.float32), jnp.zeros((1, dout), jnp.float32)
        params += [w1, b1, w2, b2, g, be]

    w, b = lin(next(keys), enc_dims[0], output_dim)
    params += [w, b]
    return params


if __name__ == "__main__":
    input_dim, output_dim = 16, 12
    enc_dims = [32, 16, 8]
    n_enc = len(enc_dims) - 1
    batch = 8
    # NOTE: at these demo sizes the problem is latency-bound; real deployments
    # should batch many rows (>=128) per call before chasing in-kernel tweaks.

    key = jax.random.PRNGKey(0)
    kx, kp = jax.random.split(key)
    x = jax.random.normal(kx, (batch, input_dim), jnp.float32)
    params = init_params(kp, input_dim, output_dim, enc_dims)

    # One common lane-dense width for every (tiny) feature dim in this model.
    all_dims = [input_dim, output_dim] + list(enc_dims) + [2 * d for d in enc_dims]
    P = _round_up(max(all_dims), LANE)

    # Faithful f32 PyTorch-equivalent reference (with biases, gamma/beta).
    ref_faithful = _faithful_forward(x, params, n_enc)
    x_pad_ref = jnp.zeros((batch, P), jnp.float32).at[:, :input_dim].set(x)

    # (compute_dtype, force weight streaming, check against faithful PyTorch math)
    configs = [
        (jnp.float32, False, True),    # strict f32 check (proves elisions exact)
        (jnp.bfloat16, False, False),  # default path: bf16 MXU, resident weights
        (jnp.bfloat16, True, False),   # HBM weight streaming path (large-P shape)
    ]
    for compute_dtype, stream, check_faithful in configs:
        w_stack, v_stack = pack_params(params, n_enc=n_enc, pad_dim=P,
                                       compute_dtype=compute_dtype)
        run = jax.jit(functools.partial(
            latent_residual_mlp, n_enc=n_enc, output_dim=output_dim,
            compute_dtype=compute_dtype, stream_weights=stream))
        out = jax.block_until_ready(run(x, w_stack, v_stack))
        assert out.shape == (batch, output_dim)

        # Kernel must match the identical-math pure-JAX forward tightly.
        ref_kernel_math = _fused_forward(
            x_pad_ref, lambda i: w_stack[i], v_stack,
            n_enc=n_enc, compute_dtype=compute_dtype)[:, :output_dim]
        assert jnp.allclose(out, ref_kernel_math, atol=2e-3, rtol=2e-3), \
            f"kernel vs same-math reference mismatch (dtype={compute_dtype}, stream={stream})"

        if check_faithful:
            # Proves bias/gamma/beta elision + padding are exact (f32).
            assert jnp.allclose(out, ref_faithful, atol=1e-3, rtol=1e-3), \
                "f32 kernel vs faithful PyTorch-style reference mismatch"

    print("KERNEL_OK")
</pallas_src>

<mosaic_0001>
module attributes {stable_mosaic.version = 11 : i64} {
  func.func @kernel(%arg0: memref<8x16xf32, #tpu.memory_space<vmem>>, %arg1: memref<8x128xf32, #tpu.memory_space<vmem>>, %arg2: memref<10x128x128xf32, #tpu.memory_space<vmem>>, %arg3: memref<8x128xf32, #tpu.memory_space<vmem>>) attributes {dimension_semantics = [], scalar_prefetch = 0 : i64, scratch_operands = 0 : i64, tpu.core_type = #tpu.core_type<tc>} {
    %c0 = arith.constant 0 : index
    %c0_0 = arith.constant 0 : index
    %0 = vector.load %arg0[%c0, %c0_0] : memref<8x16xf32, #tpu.memory_space<vmem>>, vector<8x16xf32>
    %cst = arith.constant 0.000000e+00 : f32
    %1 = vector.broadcast %cst : f32 to vector<8x112xf32>
    %2 = tpu.concatenate %0, %1 in 1 : vector<8x16xf32>, vector<8x112xf32> -> vector<8x128xf32>
    %c0_1 = arith.constant 0 : index
    %c0_2 = arith.constant 0 : index
    %3 = vector.load %arg1[%c0_1, %c0_2] : memref<8x128xf32, #tpu.memory_space<vmem>>, vector<8x128xf32>
    %c0_3 = arith.constant 0 : index
    %c0_4 = arith.constant 0 : index
    %c0_5 = arith.constant 0 : index
    %4 = vector.load %arg2[%c0_3, %c0_4, %c0_5] : memref<10x128x128xf32, #tpu.memory_space<vmem>>, vector<1x128x128xf32>
    %5 = vector.shape_cast %4 : vector<1x128x128xf32> to vector<128x128xf32>
    %cst_6 = arith.constant dense<0.000000e+00> : vector<8x128xf32>
    %6 = tpu.matmul %2, %5, %cst_6 {dimension_numbers = #tpu.dot_dimension_numbers<[1], [0], [0], [1], [0, 0, 1, 1], [], []>} : vector<8x128xf32>, vector<128x128xf32>, vector<8x128xf32> -> vector<8x128xf32>
    %7 = vector.extract_strided_slice %3 {offsets = [0, 0], sizes = [1, 128], strides = [1, 1]} : vector<8x128xf32> to vector<1x128xf32>
    %8 = vector.broadcast %7 : vector<1x128xf32> to vector<8x128xf32>
    %9 = arith.addf %6, %8 : vector<8x128xf32>
    %cst_7 = arith.constant 0.000000e+00 : f32
    %10 = vector.broadcast %cst_7 : f32 to vector<8x128xf32>
    %11 = arith.cmpf oge, %9, %10 : vector<8x128xf32>
    %cst_8 = arith.constant 0.00999999977 : f32
    %12 = vector.broadcast %cst_8 : f32 to vector<8x128xf32>
    %13 = arith.mulf %12, %9 : vector<8x128xf32>
    %14 = arith.select %11, %9, %13 : vector<8x128xi1>, vector<8x128xf32>
    %c1 = arith.constant 1 : index
    %c0_9 = arith.constant 0 : index
    %c0_10 = arith.constant 0 : index
    %15 = vector.load %arg2[%c1, %c0_9, %c0_10] : memref<10x128x128xf32, #tpu.memory_space<vmem>>, vector<1x128x128xf32>
    %16 = vector.shape_cast %15 : vector<1x128x128xf32> to vector<128x128xf32>
    %cst_11 = arith.constant dense<0.000000e+00> : vector<8x128xf32>
    %17 = tpu.matmul %14, %16, %cst_11 {dimension_numbers = #tpu.dot_dimension_numbers<[1], [0], [0], [1], [0, 0, 1, 1], [], []>} : vector<8x128xf32>, vector<128x128xf32>, vector<8x128xf32> -> vector<8x128xf32>
    %cst_12 = arith.constant dense<0.000000e+00> : vector<128xf32>
    %18 = vector.multi_reduction <add>, %17, %cst_12 [0] : vector<8x128xf32> to vector<128xf32>
    %19 = vector.shape_cast %18 : vector<128xf32> to vector<1x128xf32>
    %cst_13 = arith.constant 1.250000e-01 : f32
    %20 = vector.broadcast %cst_13 : f32 to vector<1x128xf32>
    %21 = arith.mulf %19, %20 : vector<1x128xf32>
    %22 = vector.broadcast %21 : vector<1x128xf32> to vector<8x128xf32>
    %23 = arith.subf %17, %22 : vector<8x128xf32>
    %24 = arith.mulf %23, %23 : vector<8x128xf32>
    %cst_14 = arith.constant dense<0.000000e+00> : vector<128xf32>
    %25 = vector.multi_reduction <add>, %24, %cst_14 [0] : vector<8x128xf32> to vector<128xf32>
    %26 = vector.shape_cast %25 : vector<128xf32> to vector<1x128xf32>
    %cst_15 = arith.constant 1.250000e-01 : f32
    %27 = vector.broadcast %cst_15 : f32 to vector<1x128xf32>
    %28 = arith.mulf %26, %27 : vector<1x128xf32>
    %cst_16 = arith.constant 9.99999974E-6 : f32
    %29 = vector.broadcast %cst_16 : f32 to vector<1x128xf32>
    %30 = arith.addf %28, %29 : vector<1x128xf32>
    %31 = math.rsqrt %30 : vector<1x128xf32>
    %32 = vector.broadcast %31 : vector<1x128xf32> to vector<8x128xf32>
    %33 = arith.mulf %23, %32 : vector<8x128xf32>
    %cst_17 = arith.constant 0.000000e+00 : f32
    %34 = vector.broadcast %cst_17 : f32 to vector<8x128xf32>
    %35 = arith.cmpf oge, %33, %34 : vector<8x128xf32>
    %cst_18 = arith.constant 0.00999999977 : f32
    %36 = vector.broadcast %cst_18 : f32 to vector<8x128xf32>
    %37 = arith.mulf %36, %33 : vector<8x128xf32>
    %38 = arith.select %35, %33, %37 : vector<8x128xi1>, vector<8x128xf32>
    %c2 = arith.constant 2 : index
    %c0_19 = arith.constant 0 : index
    %c0_20 = arith.constant 0 : index
    %39 = vector.load %arg2[%c2, %c0_19, %c0_20] : memref<10x128x128xf32, #tpu.memory_space<vmem>>, vector<1x128x128xf32>
    %40 = vector.shape_cast %39 : vector<1x128x128xf32> to vector<128x128xf32>
    %cst_21 = arith.constant dense<0.000000e+00> : vector<8x128xf32>
    %41 = tpu.matmul %38, %40, %cst_21 {dimension_numbers = #tpu.dot_dimension_numbers<[1], [0], [0], [1], [0, 0, 1, 1], [], []>} : vector<8x128xf32>, vector<128x128xf32>, vector<8x128xf32> -> vector<8x128xf32>
    %cst_22 = arith.constant dense<0.000000e+00> : vector<128xf32>
    %42 = vector.multi_reduction <add>, %41, %cst_22 [0] : vector<8x128xf32> to vector<128xf32>
    %43 = vector.shape_cast %42 : vector<128xf32> to vector<1x128xf32>
    %cst_23 = arith.constant 1.250000e-01 : f32
    %44 = vector.broadcast %cst_23 : f32 to vector<1x128xf32>
    %45 = arith.mulf %43, %44 : vector<1x128xf32>
    %46 = vector.broadcast %45 : vector<1x128xf32> to vector<8x128xf32>
    %47 = arith.subf %41, %46 : vector<8x128xf32>
    %48 = arith.mulf %47, %47 : vector<8x128xf32>
    %cst_24 = arith.constant dense<0.000000e+00> : vector<128xf32>
    %49 = vector.multi_reduction <add>, %48, %cst_24 [0] : vector<8x128xf32> to vector<128xf32>
    %50 = vector.shape_cast %49 : vector<128xf32> to vector<1x128xf32>
    %cst_25 = arith.constant 1.250000e-01 : f32
    %51 = vector.broadcast %cst_25 : f32 to vector<1x128xf32>
    %52 = arith.mulf %50, %51 : vector<1x128xf32>
    %cst_26 = arith.constant 9.99999974E-6 : f32
    %53 = vector.broadcast %cst_26 : f32 to vector<1x128xf32>
    %54 = arith.addf %52, %53 : vector<1x128xf32>
    %55 = math.rsqrt %54 : vector<1x128xf32>
    %56 = vector.broadcast %55 : vector<1x128xf32> to vector<8x128xf32>
    %57 = arith.mulf %47, %56 : vector<8x128xf32>
    %cst_27 = arith.constant 0.000000e+00 : f32
    %58 = vector.broadcast %cst_27 : f32 to vector<8x128xf32>
    %59 = arith.cmpf oge, %57, %58 : vector<8x128xf32>
    %cst_28 = arith.constant 0.00999999977 : f32
    %60 = vector.broadcast %cst_28 : f32 to vector<8x128xf32>
    %61 = arith.mulf %60, %57 : vector<8x128xf32>
    %62 = arith.select %59, %57, %61 : vector<8x128xi1>, vector<8x128xf32>
    %c3 = arith.constant 3 : index
    %c0_29 = arith.constant 0 : index
    %c0_30 = arith.constant 0 : index
    %63 = vector.load %arg2[%c3, %c0_29, %c0_30] : memref<10x128x128xf32, #tpu.memory_space<vmem>>, vector<1x128x128xf32>
    %64 = vector.shape_cast %63 : vector<1x128x128xf32> to vector<128x128xf32>
    %cst_31 = arith.constant dense<0.000000e+00> : vector<8x128xf32>
    %65 = tpu.matmul %62, %64, %cst_31 {dimension_numbers = #tpu.dot_dimension_numbers<[1], [0], [0], [1], [0, 0, 1, 1], [], []>} : vector<8x128xf32>, vector<128x128xf32>, vector<8x128xf32> -> vector<8x128xf32>
    %cst_32 = arith.constant dense<0.000000e+00> : vector<128xf32>
    %66 = vector.multi_reduction <add>, %65, %cst_32 [0] : vector<8x128xf32> to vector<128xf32>
    %67 = vector.shape_cast %66 : vector<128xf32> to vector<1x128xf32>
    %cst_33 = arith.constant 1.250000e-01 : f32
    %68 = vector.broadcast %cst_33 : f32 to vector<1x128xf32>
    %69 = arith.mulf %67, %68 : vector<1x128xf32>
    %70 = vector.broadcast %69 : vector<1x128xf32> to vector<8x128xf32>
    %71 = arith.subf %65, %70 : vector<8x128xf32>
    %72 = arith.mulf %71, %71 : vector<8x128xf32>
    %cst_34 = arith.constant dense<0.000000e+00> : vector<128xf32>
    %73 = vector.multi_reduction <add>, %72, %cst_34 [0] : vector<8x128xf32> to vector<128xf32>
    %74 = vector.shape_cast %73 : vector<128xf32> to vector<1x128xf32>
    %cst_35 = arith.constant 1.250000e-01 : f32
    %75 = vector.broadcast %cst_35 : f32 to vector<1x128xf32>
    %76 = arith.mulf %74, %75 : vector<1x128xf32>
    %cst_36 = arith.constant 9.99999974E-6 : f32
    %77 = vector.broadcast %cst_36 : f32 to vector<1x128xf32>
    %78 = arith.addf %76, %77 : vector<1x128xf32>
    %79 = math.rsqrt %78 : vector<1x128xf32>
    %80 = vector.broadcast %79 : vector<1x128xf32> to vector<8x128xf32>
    %81 = arith.mulf %71, %80 : vector<8x128xf32>
    %cst_37 = arith.constant 0.000000e+00 : f32
    %82 = vector.broadcast %cst_37 : f32 to vector<8x128xf32>
    %83 = arith.cmpf oge, %81, %82 : vector<8x128xf32>
    %cst_38 = arith.constant 0.00999999977 : f32
    %84 = vector.broadcast %cst_38 : f32 to vector<8x128xf32>
    %85 = arith.mulf %84, %81 : vector<8x128xf32>
    %86 = arith.select %83, %81, %85 : vector<8x128xi1>, vector<8x128xf32>
    %c4 = arith.constant 4 : index
    %c0_39 = arith.constant 0 : index
    %c0_40 = arith.constant 0 : index
    %87 = vector.load %arg2[%c4, %c0_39, %c0_40] : memref<10x128x128xf32, #tpu.memory_space<vmem>>, vector<1x128x128xf32>
    %88 = vector.shape_cast %87 : vector<1x128x128xf32> to vector<128x128xf32>
    %cst_41 = arith.constant dense<0.000000e+00> : vector<8x128xf32>
    %89 = tpu.matmul %86, %88, %cst_41 {dimension_numbers = #tpu.dot_dimension_numbers<[1], [0], [0], [1], [0, 0, 1, 1], [], []>} : vector<8x128xf32>, vector<128x128xf32>, vector<8x128xf32> -> vector<8x128xf32>
    %cst_42 = arith.constant dense<0.000000e+00> : vector<128xf32>
    %90 = vector.multi_reduction <add>, %89, %cst_42 [0] : vector<8x128xf32> to vector<128xf32>
    %91 = vector.shape_cast %90 : vector<128xf32> to vector<1x128xf32>
    %cst_43 = arith.constant 1.250000e-01 : f32
    %92 = vector.broadcast %cst_43 : f32 to vector<1x128xf32>
    %93 = arith.mulf %91, %92 : vector<1x128xf32>
    %94 = vector.broadcast %93 : vector<1x128xf32> to vector<8x128xf32>
    %95 = arith.subf %89, %94 : vector<8x128xf32>
    %96 = arith.mulf %95, %95 : vector<8x128xf32>
    %cst_44 = arith.constant dense<0.000000e+00> : vector<128xf32>
    %97 = vector.multi_reduction <add>, %96, %cst_44 [0] : vector<8x128xf32> to vector<128xf32>
    %98 = vector.shape_cast %97 : vector<128xf32> to vector<1x128xf32>
    %cst_45 = arith.constant 1.250000e-01 : f32
    %99 = vector.broadcast %cst_45 : f32 to vector<1x128xf32>
    %100 = arith.mulf %98, %99 : vector<1x128xf32>
    %cst_46 = arith.constant 9.99999974E-6 : f32
    %101 = vector.broadcast %cst_46 : f32 to vector<1x128xf32>
    %102 = arith.addf %100, %101 : vector<1x128xf32>
    %103 = math.rsqrt %102 : vector<1x128xf32>
    %104 = vector.broadcast %103 : vector<1x128xf32> to vector<8x128xf32>
    %105 = arith.mulf %95, %104 : vector<8x128xf32>
    %cst_47 = arith.constant 0.000000e+00 : f32
    %106 = vector.broadcast %cst_47 : f32 to vector<8x128xf32>
    %107 = arith.cmpf oge, %105, %106 : vector<8x128xf32>
    %cst_48 = arith.constant 0.00999999977 : f32
    %108 = vector.broadcast %cst_48 : f32 to vector<8x128xf32>
    %109 = arith.mulf %108, %105 : vector<8x128xf32>
    %110 = arith.select %107, %105, %109 : vector<8x128xi1>, vector<8x128xf32>
    %c5 = arith.constant 5 : index
    %c0_49 = arith.constant 0 : index
    %c0_50 = arith.constant 0 : index
    %111 = vector.load %arg2[%c5, %c0_49, %c0_50] : memref<10x128x128xf32, #tpu.memory_space<vmem>>, vector<1x128x128xf32>
    %112 = vector.shape_cast %111 : vector<1x128x128xf32> to vector<128x128xf32>
    %cst_51 = arith.constant dense<0.000000e+00> : vector<8x128xf32>
    %113 = tpu.matmul %110, %112, %cst_51 {dimension_numbers = #tpu.dot_dimension_numbers<[1], [0], [0], [1], [0, 0, 1, 1], [], []>} : vector<8x128xf32>, vector<128x128xf32>, vector<8x128xf32> -> vector<8x128xf32>
    %114 = vector.extract_strided_slice %3 {offsets = [1, 0], sizes = [1, 128], strides = [1, 1]} : vector<8x128xf32> to vector<1x128xf32>
    %115 = vector.broadcast %114 : vector<1x128xf32> to vector<8x128xf32>
    %116 = arith.addf %113, %115 : vector<8x128xf32>
    %cst_52 = arith.constant 0.000000e+00 : f32
    %117 = vector.broadcast %cst_52 : f32 to vector<8x128xf32>
    %118 = arith.cmpf oge, %116, %117 : vector<8x128xf32>
    %cst_53 = arith.constant 0.00999999977 : f32
    %119 = vector.broadcast %cst_53 : f32 to vector<8x128xf32>
    %120 = arith.mulf %119, %116 : vector<8x128xf32>
    %121 = arith.select %118, %116, %120 : vector<8x128xi1>, vector<8x128xf32>
    %c6 = arith.constant 6 : index
    %c0_54 = arith.constant 0 : index
    %c0_55 = arith.constant 0 : index
    %122 = vector.load %arg2[%c6, %c0_54, %c0_55] : memref<10x128x128xf32, #tpu.memory_space<vmem>>, vector<1x128x128xf32>
    %123 = vector.shape_cast %122 : vector<1x128x128xf32> to vector<128x128xf32>
    %cst_56 = arith.constant dense<0.000000e+00> : vector<8x128xf32>
    %124 = tpu.matmul %121, %123, %cst_56 {dimension_numbers = #tpu.dot_dimension_numbers<[1], [0], [0], [1], [0, 0, 1, 1], [], []>} : vector<8x128xf32>, vector<128x128xf32>, vector<8x128xf32> -> vector<8x128xf32>
    %cst_57 = arith.constant dense<0.000000e+00> : vector<128xf32>
    %125 = vector.multi_reduction <add>, %124, %cst_57 [0] : vector<8x128xf32> to vector<128xf32>
    %126 = vector.shape_cast %125 : vector<128xf32> to vector<1x128xf32>
    %cst_58 = arith.constant 1.250000e-01 : f32
    %127 = vector.broadcast %cst_58 : f32 to vector<1x128xf32>
    %128 = arith.mulf %126, %127 : vector<1x128xf32>
    %129 = vector.broadcast %128 : vector<1x128xf32> to vector<8x128xf32>
    %130 = arith.subf %124, %129 : vector<8x128xf32>
    %131 = arith.mulf %130, %130 : vector<8x128xf32>
    %cst_59 = arith.constant dense<0.000000e+00> : vector<128xf32>
    %132 = vector.multi_reduction <add>, %131, %cst_59 [0] : vector<8x128xf32> to vector<128xf32>
    %133 = vector.shape_cast %132 : vector<128xf32> to vector<1x128xf32>
    %cst_60 = arith.constant 1.250000e-01 : f32
    %134 = vector.broadcast %cst_60 : f32 to vector<1x128xf32>
    %135 = arith.mulf %133, %134 : vector<1x128xf32>
    %cst_61 = arith.constant 9.99999974E-6 : f32
    %136 = vector.broadcast %cst_61 : f32 to vector<1x128xf32>
    %137 = arith.addf %135, %136 : vector<1x128xf32>
    %138 = math.rsqrt %137 : vector<1x128xf32>
    %139 = vector.broadcast %138 : vector<1x128xf32> to vector<8x128xf32>
    %140 = arith.mulf %130, %139 : vector<8x128xf32>
    %141 = arith.addf %140, %57 : vector<8x128xf32>
    %cst_62 = arith.constant 0.000000e+00 : f32
    %142 = vector.broadcast %cst_62 : f32 to vector<8x128xf32>
    %143 = arith.cmpf oge, %141, %142 : vector<8x128xf32>
    %cst_63 = arith.constant 0.00999999977 : f32
    %144 = vector.broadcast %cst_63 : f32 to vector<8x128xf32>
    %145 = arith.mulf %144, %141 : vector<8x128xf32>
    %146 = arith.select %143, %141, %145 : vector<8x128xi1>, vector<8x128xf32>
    %cst_64 = arith.constant 0.000000e+00 : f32
    %147 = vector.broadcast %cst_64 : f32 to vector<8x128xf32>
    %148 = arith.cmpf oge, %146, %147 : vector<8x128xf32>
    %cst_65 = arith.constant 0.00999999977 : f32
    %149 = vector.broadcast %cst_65 : f32 to vector<8x128xf32>
    %150 = arith.mulf %149, %146 : vector<8x128xf32>
    %151 = arith.select %148, %146, %150 : vector<8x128xi1>, vector<8x128xf32>
    %c7 = arith.constant 7 : index
    %c0_66 = arith.constant 0 : index
    %c0_67 = arith.constant 0 : index
    %152 = vector.load %arg2[%c7, %c0_66, %c0_67] : memref<10x128x128xf32, #tpu.memory_space<vmem>>, vector<1x128x128xf32>
    %153 = vector.shape_cast %152 : vector<1x128x128xf32> to vector<128x128xf32>
    %cst_68 = arith.constant dense<0.000000e+00> : vector<8x128xf32>
    %154 = tpu.matmul %151, %153, %cst_68 {dimension_numbers = #tpu.dot_dimension_numbers<[1], [0], [0], [1], [0, 0, 1, 1], [], []>} : vector<8x128xf32>, vector<128x128xf32>, vector<8x128xf32> -> vector<8x128xf32>
    %155 = vector.extract_strided_slice %3 {offsets = [2, 0], sizes = [1, 128], strides = [1, 1]} : vector<8x128xf32> to vector<1x128xf32>
    %156 = vector.broadcast %155 : vector<1x128xf32> to vector<8x128xf32>
    %157 = arith.addf %154, %156 : vector<8x128xf32>
    %cst_69 = arith.constant 0.000000e+00 : f32
    %158 = vector.broadcast %cst_69 : f32 to vector<8x128xf32>
    %159 = arith.cmpf oge, %157, %158 : vector<8x128xf32>
    %cst_70 = arith.constant 0.00999999977 : f32
    %160 = vector.broadcast %cst_70 : f32 to vector<8x128xf32>
    %161 = arith.mulf %160, %157 : vector<8x128xf32>
    %162 = arith.select %159, %157, %161 : vector<8x128xi1>, vector<8x128xf32>
    %c8 = arith.constant 8 : index
    %c0_71 = arith.constant 0 : index
    %c0_72 = arith.constant 0 : index
    %163 = vector.load %arg2[%c8, %c0_71, %c0_72] : memref<10x128x128xf32, #tpu.memory_space<vmem>>, vector<1x128x128xf32>
    %164 = vector.shape_cast %163 : vector<1x128x128xf32> to vector<128x128xf32>
    %cst_73 = arith.constant dense<0.000000e+00> : vector<8x128xf32>
    %165 = tpu.matmul %162, %164, %cst_73 {dimension_numbers = #tpu.dot_dimension_numbers<[1], [0], [0], [1], [0, 0, 1, 1], [], []>} : vector<8x128xf32>, vector<128x128xf32>, vector<8x128xf32> -> vector<8x128xf32>
    %cst_74 = arith.constant dense<0.000000e+00> : vector<128xf32>
    %166 = vector.multi_reduction <add>, %165, %cst_74 [0] : vector<8x128xf32> to vector<128xf32>
    %167 = vector.shape_cast %166 : vector<128xf32> to vector<1x128xf32>
    %cst_75 = arith.constant 1.250000e-01 : f32
    %168 = vector.broadcast %cst_75 : f32 to vector<1x128xf32>
    %169 = arith.mulf %167, %168 : vector<1x128xf32>
    %170 = vector.broadcast %169 : vector<1x128xf32> to vector<8x128xf32>
    %171 = arith.subf %165, %170 : vector<8x128xf32>
    %172 = arith.mulf %171, %171 : vector<8x128xf32>
    %cst_76 = arith.constant dense<0.000000e+00> : vector<128xf32>
    %173 = vector.multi_reduction <add>, %172, %cst_76 [0] : vector<8x128xf32> to vector<128xf32>
    %174 = vector.shape_cast %173 : vector<128xf32> to vector<1x128xf32>
    %cst_77 = arith.constant 1.250000e-01 : f32
    %175 = vector.broadcast %cst_77 : f32 to vector<1x128xf32>
    %176 = arith.mulf %174, %175 : vector<1x128xf32>
    %cst_78 = arith.constant 9.99999974E-6 : f32
    %177 = vector.broadcast %cst_78 : f32 to vector<1x128xf32>
    %178 = arith.addf %176, %177 : vector<1x128xf32>
    %179 = math.rsqrt %178 : vector<1x128xf32>
    %180 = vector.broadcast %179 : vector<1x128xf32> to vector<8x128xf32>
    %181 = arith.mulf %171, %180 : vector<8x128xf32>
    %182 = arith.addf %181, %9 : vector<8x128xf32>
    %cst_79 = arith.constant 0.000000e+00 : f32
    %183 = vector.broadcast %cst_79 : f32 to vector<8x128xf32>
    %184 = arith.cmpf oge, %182, %183 : vector<8x128xf32>
    %cst_80 = arith.constant 0.00999999977 : f32
    %185 = vector.broadcast %cst_80 : f32 to vector<8x128xf32>
    %186 = arith.mulf %185, %182 : vector<8x128xf32>
    %187 = arith.select %184, %182, %186 : vector<8x128xi1>, vector<8x128xf32>
    %c9 = arith.constant 9 : index
    %c0_81 = arith.constant 0 : index
    %c0_82 = arith.constant 0 : index
    %188 = vector.load %arg2[%c9, %c0_81, %c0_82] : memref<10x128x128xf32, #tpu.memory_space<vmem>>, vector<1x128x128xf32>
    %189 = vector.shape_cast %188 : vector<1x128x128xf32> to vector<128x128xf32>
    %cst_83 = arith.constant dense<0.000000e+00> : vector<8x128xf32>
    %190 = tpu.matmul %187, %189, %cst_83 {dimension_numbers = #tpu.dot_dimension_numbers<[1], [0], [0], [1], [0, 0, 1, 1], [], []>} : vector<8x128xf32>, vector<128x128xf32>, vector<8x128xf32> -> vector<8x128xf32>
    %191 = vector.extract_strided_slice %3 {offsets = [3, 0], sizes = [1, 128], strides = [1, 1]} : vector<8x128xf32> to vector<1x128xf32>
    %192 = vector.broadcast %191 : vector<1x128xf32> to vector<8x128xf32>
    %193 = arith.addf %190, %192 : vector<8x128xf32>
    %c0_84 = arith.constant 0 : index
    %c0_85 = arith.constant 0 : index
    %194 = vector.load %arg3[%c0_84, %c0_85] : memref<8x128xf32, #tpu.memory_space<vmem>>, vector<8x128xf32>
    tpu.vector_store %arg3[%c0_84, %c0_85], %193 {strides = array<i32>} : memref<8x128xf32, #tpu.memory_space<vmem>>, vector<8x128xf32>,
    return
  }
}

</mosaic_0001>

<llo_original>
// kernel: latent_residual_mlp.1
$region0: #{latent_residual_mlp.1}
  #allocation0 [shape = 'u32[]', space=smem, size = 0x4, offset = 0x4, fixed_abs, tag = 'smem constant byte address 0x4 - core index']
  #allocation1 [shape = 'u32[72,128]{1,0:T(1,128)}', space=vmem, size = 0x9000, scoped, tag = 'internal scratch']
  %s0 = inlined_call_operand.hbm [shape: f32[8,16], index: 0, kind: input, shape index: {}]
  %s1 = inlined_call_operand.hbm [shape: f32[8,128], index: 1, kind: input, shape index: {}]
  %s2 = inlined_call_operand.hbm [shape: f32[10,128,128], index: 2, kind: input, shape index: {}]
  %s3 = inlined_call_operand.hbm [shape: f32[8,128], index: 3, kind: output, shape index: {}]
  %s4 = sld [smem:[#allocation0]]
  $region34: #{latent_residual_mlp.1} parent=0
    _
  %s6 = ssub.s32 1, %s4
  %s7 = scalar_select 0, %s6, %s4
  $region1: #{latent_residual_mlp.1} parent=0
    #allocation2 [shape = 'u8[4096]{0}', space=vmem, size = 0x1000, scoped, tag = 'input window, operand 0, single buffered']
    #allocation3 [shape = 's32[1]{0}', space=sflag, size = 0x4, scoped, tag = 'scoped memory for latent_residual_mlp.1']
    #allocation4 [shape = 's32[1]{0}', space=sflag, size = 0x4, scoped, tag = 'scoped memory for latent_residual_mlp.1']
    #allocation5 [shape = 'u8[4096]{0}', space=vmem, size = 0x1000, scoped, tag = 'input window, operand 1, single buffered']
    #allocation6 [shape = 's32[1]{0}', space=sflag, size = 0x4, scoped, tag = 'scoped memory for latent_residual_mlp.1']
    #allocation7 [shape = 'u8[655360]{0}', space=vmem, size = 0xa0000, scoped, tag = 'input window, operand 2, single buffered']
    #allocation8 [shape = 'u8[4096]{0}', space=vmem, size = 0x1000, scoped, tag = 'output window, operand 0, single buffered']
    %8 = vsyncpa [#allocation3], 0
    %9 = vsyncpa [#allocation6], 0
    %10 = vsyncpa [#allocation4], 0
    // Predicated region
    $region2: #{latent_residual_mlp.1} parent=1 // pred_check
      _
    $region3: #{latent_residual_mlp.1} parent=1 // pred_check_branch
      %12 = sbr.rel (0) target = $region5
    $region4: #{latent_residual_mlp.1} parent=1 // pred_region
      %14 = vsyncadd [#allocation3], 0
      %s16 = sshll.u32 %s0, 4
      %s17 = int_to_ptr.hbm [resolvable:$true] %s16
      %s18 = sshll.u32 [#allocation2], 4
      %s19 = int_to_ptr.vmem [resolvable:$true] %s18
      %21 = dma.hbm_to_vmem [thread:$0]  %s17, 128, %s19, [#allocation3]
    $region5: #{latent_residual_mlp.1} parent=1 // pred_fallthru
      _
    // Predicated region
    $region6: #{latent_residual_mlp.1} parent=1 // pred_check
      _
    $region7: #{latent_residual_mlp.1} parent=1 // pred_check_branch
      %23 = sbr.rel (0) target = $region9
    $region8: #{latent_residual_mlp.1} parent=1 // pred_region
      %25 = vsyncadd [#allocation6], 0
      %s27 = sshll.u32 %s1, 4
      %s28 = int_to_ptr.hbm [resolvable:$true] %s27
      %s29 = sshll.u32 [#allocation5], 4
      %s30 = int_to_ptr.vmem [resolvable:$true] %s29
      %32 = dma.hbm_to_vmem [thread:$0]  %s28, 128, %s30, [#allocation6]
    $region9: #{latent_residual_mlp.1} parent=1 // pred_fallthru
      _
    // Predicated region
    $region10: #{latent_residual_mlp.1} parent=1 // pred_check
      _
    $region11: #{latent_residual_mlp.1} parent=1 // pred_check_branch
      %34 = sbr.rel (0) target = $region13
    $region12: #{latent_residual_mlp.1} parent=1 // pred_region
      %36 = vsyncadd [#allocation6], 0
      %s37 = sshll.u32 %s2, 4
      %s38 = int_to_ptr.hbm [resolvable:$true] %s37
      %s39 = sshll.u32 [#allocation7], 4
      %s40 = int_to_ptr.vmem [resolvable:$true] %s39
      %45 = dma.hbm_to_vmem [thread:$0]  %s38, 20480, %s40, [#allocation6], 128, 128, 8
    $region13: #{latent_residual_mlp.1} parent=1 // pred_fallthru
      _
    // Predicated region
    $region14: #{latent_residual_mlp.1} parent=1 // pred_check
      _
    $region15: #{latent_residual_mlp.1} parent=1 // pred_check_branch
      %47 = sbr.rel (0) target = $region17
    $region16: #{latent_residual_mlp.1} parent=1 // pred_region
      %49 = dma.done [#allocation3], 128
    $region17: #{latent_residual_mlp.1} parent=1 // pred_fallthru
      _
    // Predicated region
    $region18: #{latent_residual_mlp.1} parent=1 // pred_check
      _
    $region19: #{latent_residual_mlp.1} parent=1 // pred_check_branch
      %51 = sbr.rel (0) target = $region21
    $region20: #{latent_residual_mlp.1} parent=1 // pred_region
      %53 = dma.done [#allocation6], 128
    $region21: #{latent_residual_mlp.1} parent=1 // pred_fallthru
      _
    // Predicated region
    $region22: #{latent_residual_mlp.1} parent=1 // pred_check
      _
    $region23: #{latent_residual_mlp.1} parent=1 // pred_check_branch
      %55 = sbr.rel (0) target = $region25
    $region24: #{latent_residual_mlp.1} parent=1 // pred_region
      %57 = dma.done [#allocation6], 20480
    $region25: #{latent_residual_mlp.1} parent=1 // pred_fallthru
      _
    %v58 = vld [vmem:[#allocation2] sm:$0xff]
    %vm59 = vcmask 130048
    %v60 = vsel %vm59, %v58, 0.0
    %v61 = vld [vmem:[#allocation5] sm:$0xff]
    %v62 = vld [vmem:[#allocation7] sm:$0xff]
    %v63 = vld [vmem:[#allocation7 + $0x8] sm:$0xff]
    %v64 = vld [vmem:[#allocation7 + $0x10] sm:$0xff]
    %v65 = vld [vmem:[#allocation7 + $0x18] sm:$0xff]
    %v66 = vld [vmem:[#allocation7 + $0x20] sm:$0xff]
    %v67 = vld [vmem:[#allocation7 + $0x28] sm:$0xff]
    %v68 = vld [vmem:[#allocation7 + $0x30] sm:$0xff]
    %v69 = vld [vmem:[#allocation7 + $0x38] sm:$0xff]
    %v70 = vld [vmem:[#allocation7 + $0x40] sm:$0xff]
    %v71 = vld [vmem:[#allocation7 + $0x48] sm:$0xff]
    %v72 = vld [vmem:[#allocation7 + $0x50] sm:$0xff]
    %v73 = vld [vmem:[#allocation7 + $0x58] sm:$0xff]
    %v74 = vld [vmem:[#allocation7 + $0x60] sm:$0xff]
    %v75 = vld [vmem:[#allocation7 + $0x68] sm:$0xff]
    %v76 = vld [vmem:[#allocation7 + $0x70] sm:$0xff]
    %v77 = vld [vmem:[#allocation7 + $0x78] sm:$0xff]
    %v78 = vperm.slane %v61, 0
    %79 = vmatpush.msra.mxu0 %v77
    %80 = vmatpush.msra.mxu0 %v76
    %81 = vmatpush.msra.mxu0 %v75
    %82 = vmatpush.msra.mxu0 %v74
    %83 = vmatpush.msra.mxu0 %v73
    %84 = vmatpush.msra.mxu0 %v72
    %85 = vmatpush.msra.mxu0 %v71
    %86 = vmatpush.msra.mxu0 %v70
    %87 = vmatpush.msra.mxu0 %v69
    %88 = vmatpush.msra.mxu0 %v68
    %89 = vmatpush.msra.mxu0 %v67
    %90 = vmatpush.msra.mxu0 %v66
    %91 = vmatpush.msra.mxu0 %v65
    %92 = vmatpush.msra.mxu0 %v64
    %93 = vmatpush.msra.mxu0 %v63
    %94 = vmatpush.msra.mxu0 %v62
    %95 = vmatmul.f32.gmra.mxu0 %v60
    %v96 = vpop.f32.mrf.mxu0
    %v97 = vadd.f32 %v78, %v96
    %98 = vdwg.mxu0
    %vm99 = vcmp.ge.f32.partialorder %v97, 0.0
    %v100 = vmul.f32 %v97, 0.01
    %v101 = vsel %vm99, %v97, %v100
    %s102 = scalar_lea.vmem [#allocation7], 128
    %v103 = vld [vmem:[%s102] sm:$0xff]
    %v104 = vld [vmem:[%s102 + $0x8] sm:$0xff]
    %v105 = vld [vmem:[%s102 + $0x10] sm:$0xff]
    %v106 = vld [vmem:[%s102 + $0x18] sm:$0xff]
    %v107 = vld [vmem:[%s102 + $0x20] sm:$0xff]
    %v108 = vld [vmem:[%s102 + $0x28] sm:$0xff]
    %v109 = vld [vmem:[%s102 + $0x30] sm:$0xff]
    %v110 = vld [vmem:[%s102 + $0x38] sm:$0xff]
    %v111 = vld [vmem:[%s102 + $0x40] sm:$0xff]
    %v112 = vld [vmem:[%s102 + $0x48] sm:$0xff]
    %v113 = vld [vmem:[%s102 + $0x50] sm:$0xff]
    %v114 = vld [vmem:[%s102 + $0x58] sm:$0xff]
    %v115 = vld [vmem:[%s102 + $0x60] sm:$0xff]
    %v116 = vld [vmem:[%s102 + $0x68] sm:$0xff]
    %v117 = vld [vmem:[%s102 + $0x70] sm:$0xff]
    %v118 = vld [vmem:[%s102 + $0x78] sm:$0xff]
    %119 = vmatpush.msra.mxu0 %v118
    %120 = vmatpush.msra.mxu0 %v117
    %121 = vmatpush.msra.mxu0 %v116
    %122 = vmatpush.msra.mxu0 %v115
    %123 = vmatpush.msra.mxu0 %v114
    %124 = vmatpush.msra.mxu0 %v113
    %125 = vmatpush.msra.mxu0 %v112
    %126 = vmatpush.msra.mxu0 %v111
    %127 = vmatpush.msra.mxu0 %v110
    %128 = vmatpush.msra.mxu0 %v109
    %129 = vmatpush.msra.mxu0 %v108
    %130 = vmatpush.msra.mxu0 %v107
    %131 = vmatpush.msra.mxu0 %v106
    %132 = vmatpush.msra.mxu0 %v105
    %133 = vmatpush.msra.mxu0 %v104
    %134 = vmatpush.msra.mxu0 %v103
    %135 = vmatmul.f32.gmra.mxu0 %v101
    %v136 = vpop.f32.mrf.mxu0
    %v137 = vadd.f32 0.0, %v136
    %138 = vdwg.mxu0
    %v139 = vrot.slane %v137, 4
    %v140 = vadd.f32 %v137, %v139
    %v141 = vrot.slane %v140, 2
    %v142 = vadd.f32 %v140, %v141
    %v143 = vrot.slane %v142, 1
    %v144 = vadd.f32 %v142, %v143
    %v145 = vmul.f32 %v144, 0.125
    %v146 = vsub.f32 %v137, %v145
    %v147 = vmul.f32 %v146, %v146
    %v148 = vrot.slane %v147, 4
    %v149 = vadd.f32 %v147, %v148
    %v150 = vrot.slane %v149, 2
    %v151 = vadd.f32 %v149, %v150
    %v152 = vrot.slane %v151, 1
    %v153 = vadd.f32 %v151, %v152
    %v154 = vmul.f32 %v153, 0.125
    %v155 = vadd.f32 %v154, 1e-05
    %v156 = vrsqrt.pop %v155
    %v157 = vmul.f32 %v156, %v155
    %v158 = vmul.f32 %v157, %v156
    %v159 = vmul.f32 0.5, %v158
    %v160 = vsub.f32 1.5, %v159
    %v161 = vmul.f32 %v156, %v160
    %vm162 = vweird.f32 %v155
    %vm163 = vweird.f32 %v156
    %vm164 = vmor %vm162, %vm163
    %v165 = vsel %vm164, %v156, %v161
    %v166 = vmul.f32 %v146, %v165
    %vm167 = vcmp.ge.f32.partialorder %v166, 0.0
    %v168 = vmul.f32 %v166, 0.01
    %v169 = vsel %vm167, %v166, %v168
    %s170 = scalar_lea.vmem [#allocation7], 256
    %v171 = vld [vmem:[%s170] sm:$0xff]
    %v172 = vld [vmem:[%s170 + $0x8] sm:$0xff]
    %v173 = vld [vmem:[%s170 + $0x10] sm:$0xff]
    %v174 = vld [vmem:[%s170 + $0x18] sm:$0xff]
    %v175 = vld [vmem:[%s170 + $0x20] sm:$0xff]
    %v176 = vld [vmem:[%s170 + $0x28] sm:$0xff]
    %v177 = vld [vmem:[%s170 + $0x30] sm:$0xff]
    %v178 = vld [vmem:[%s170 + $0x38] sm:$0xff]
    %v179 = vld [vmem:[%s170 + $0x40] sm:$0xff]
    %v180 = vld [vmem:[%s170 + $0x48] sm:$0xff]
    %v181 = vld [vmem:[%s170 + $0x50] sm:$0xff]
    %v182 = vld [vmem:[%s170 + $0x58] sm:$0xff]
    %v183 = vld [vmem:[%s170 + $0x60] sm:$0xff]
    %v184 = vld [vmem:[%s170 + $0x68] sm:$0xff]
    %v185 = vld [vmem:[%s170 + $0x70] sm:$0xff]
    %v186 = vld [vmem:[%s170 + $0x78] sm:$0xff]
    %187 = vmatpush.msra.mxu0 %v186
    %188 = vmatpush.msra.mxu0 %v185
    %189 = vmatpush.msra.mxu0 %v184
    %190 = vmatpush.msra.mxu0 %v183
    %191 = vmatpush.msra.mxu0 %v182
    %192 = vmatpush.msra.mxu0 %v181
    %193 = vmatpush.msra.mxu0 %v180
    %194 = vmatpush.msra.mxu0 %v179
    %195 = vmatpush.msra.mxu0 %v178
    %196 = vmatpush.msra.mxu0 %v177
    %197 = vmatpush.msra.mxu0 %v176
    %198 = vmatpush.msra.mxu0 %v175
    %199 = vmatpush.msra.mxu0 %v174
    %200 = vmatpush.msra.mxu0 %v173
    %201 = vmatpush.msra.mxu0 %v172
    %202 = vmatpush.msra.mxu0 %v171
    %203 = vmatmul.f32.gmra.mxu0 %v169
    %v204 = vpop.f32.mrf.mxu0
    %v205 = vadd.f32 0.0, %v204
    %206 = vdwg.mxu0
    %v207 = vrot.slane %v205, 4
    %v208 = vadd.f32 %v205, %v207
    %v209 = vrot.slane %v208, 2
    %v210 = vadd.f32 %v208, %v209
    %v211 = vrot.slane %v210, 1
    %v212 = vadd.f32 %v210, %v211
    %v213 = vmul.f32 %v212, 0.125
    %v214 = vsub.f32 %v205, %v213
    %v215 = vmul.f32 %v214, %v214
    %v216 = vrot.slane %v215, 4
    %v217 = vadd.f32 %v215, %v216
    %v218 = vrot.slane %v217, 2
    %v219 = vadd.f32 %v217, %v218
    %v220 = vrot.slane %v219, 1
    %v221 = vadd.f32 %v219, %v220
    %v222 = vmul.f32 %v221, 0.125
    %v223 = vadd.f32 %v222, 1e-05
    %v224 = vrsqrt.pop %v223
    %v225 = vmul.f32 %v224, %v223
    %v226 = vmul.f32 %v225, %v224
    %v227 = vmul.f32 0.5, %v226
    %v228 = vsub.f32 1.5, %v227
    %v229 = vmul.f32 %v224, %v228
    %vm230 = vweird.f32 %v223
    %vm231 = vweird.f32 %v224
    %vm232 = vmor %vm230, %vm231
    %v233 = vsel %vm232, %v224, %v229
    %v234 = vmul.f32 %v214, %v233
    %vm235 = vcmp.ge.f32.partialorder %v234, 0.0
    %v236 = vmul.f32 %v234, 0.01
    %v237 = vsel %vm235, %v234, %v236
    %s238 = scalar_lea.vmem [#allocation7], 384
    %v239 = vld [vmem:[%s238] sm:$0xff]
    %v240 = vld [vmem:[%s238 + $0x8] sm:$0xff]
    %v241 = vld [vmem:[%s238 + $0x10] sm:$0xff]
    %v242 = vld [vmem:[%s238 + $0x18] sm:$0xff]
    %v243 = vld [vmem:[%s238 + $0x20] sm:$0xff]
    %v244 = vld [vmem:[%s238 + $0x28] sm:$0xff]
    %v245 = vld [vmem:[%s238 + $0x30] sm:$0xff]
    %v246 = vld [vmem:[%s238 + $0x38] sm:$0xff]
    %v247 = vld [vmem:[%s238 + $0x40] sm:$0xff]
    %v248 = vld [vmem:[%s238 + $0x48] sm:$0xff]
    %v249 = vld [vmem:[%s238 + $0x50] sm:$0xff]
    %v250 = vld [vmem:[%s238 + $0x58] sm:$0xff]
    %v251 = vld [vmem:[%s238 + $0x60] sm:$0xff]
    %v252 = vld [vmem:[%s238 + $0x68] sm:$0xff]
    %v253 = vld [vmem:[%s238 + $0x70] sm:$0xff]
    %v254 = vld [vmem:[%s238 + $0x78] sm:$0xff]
    %255 = vmatpush.msra.mxu0 %v254
    %256 = vmatpush.msra.mxu0 %v253
    %257 = vmatpush.msra.mxu0 %v252
    %258 = vmatpush.msra.mxu0 %v251
    %259 = vmatpush.msra.mxu0 %v250
    %260 = vmatpush.msra.mxu0 %v249
    %261 = vmatpush.msra.mxu0 %v248
    %262 = vmatpush.msra.mxu0 %v247
    %263 = vmatpush.msra.mxu0 %v246
    %264 = vmatpush.msra.mxu0 %v245
    %265 = vmatpush.msra.mxu0 %v244
    %266 = vmatpush.msra.mxu0 %v243
    %267 = vmatpush.msra.mxu0 %v242
    %268 = vmatpush.msra.mxu0 %v241
    %269 = vmatpush.msra.mxu0 %v240
    %270 = vmatpush.msra.mxu0 %v239
    %271 = vmatmul.f32.gmra.mxu0 %v237
    %v272 = vpop.f32.mrf.mxu0
    %v273 = vadd.f32 0.0, %v272
    %274 = vdwg.mxu0
    %v275 = vrot.slane %v273, 4
    %v276 = vadd.f32 %v273, %v275
    %v277 = vrot.slane %v276, 2
    %v278 = vadd.f32 %v276, %v277
    %v279 = vrot.slane %v278, 1
    %v280 = vadd.f32 %v278, %v279
    %v281 = vmul.f32 %v280, 0.125
    %v282 = vsub.f32 %v273, %v281
    %v283 = vmul.f32 %v282, %v282
    %v284 = vrot.slane %v283, 4
    %v285 = vadd.f32 %v283, %v284
    %v286 = vrot.slane %v285, 2
    %v287 = vadd.f32 %v285, %v286
    %v288 = vrot.slane %v287, 1
    %v289 = vadd.f32 %v287, %v288
    %v290 = vmul.f32 %v289, 0.125
    %v291 = vadd.f32 %v290, 1e-05
    %v292 = vrsqrt.pop %v291
    %v293 = vmul.f32 %v292, %v291
    %v294 = vmul.f32 %v293, %v292
    %v295 = vmul.f32 0.5, %v294
    %v296 = vsub.f32 1.5, %v295
    %v297 = vmul.f32 %v292, %v296
    %vm298 = vweird.f32 %v291
    %vm299 = vweird.f32 %v292
    %vm300 = vmor %vm298, %vm299
    %v301 = vsel %vm300, %v292, %v297
    %v302 = vmul.f32 %v282, %v301
    %vm303 = vcmp.ge.f32.partialorder %v302, 0.0
    %v304 = vmul.f32 %v302, 0.01
    %v305 = vsel %vm303, %v302, %v304
    %s306 = scalar_lea.vmem [#allocation7], 512
    %v307 = vld [vmem:[%s306] sm:$0xff]
    %v308 = vld [vmem:[%s306 + $0x8] sm:$0xff]
    %v309 = vld [vmem:[%s306 + $0x10] sm:$0xff]
    %v310 = vld [vmem:[%s306 + $0x18] sm:$0xff]
    %v311 = vld [vmem:[%s306 + $0x20] sm:$0xff]
    %v312 = vld [vmem:[%s306 + $0x28] sm:$0xff]
    %v313 = vld [vmem:[%s306 + $0x30] sm:$0xff]
    %v314 = vld [vmem:[%s306 + $0x38] sm:$0xff]
    %v315 = vld [vmem:[%s306 + $0x40] sm:$0xff]
    %v316 = vld [vmem:[%s306 + $0x48] sm:$0xff]
    %v317 = vld [vmem:[%s306 + $0x50] sm:$0xff]
    %v318 = vld [vmem:[%s306 + $0x58] sm:$0xff]
    %v319 = vld [vmem:[%s306 + $0x60] sm:$0xff]
    %v320 = vld [vmem:[%s306 + $0x68] sm:$0xff]
    %v321 = vld [vmem:[%s306 + $0x70] sm:$0xff]
    %v322 = vld [vmem:[%s306 + $0x78] sm:$0xff]
    %323 = vmatpush.msra.mxu0 %v322
    %324 = vmatpush.msra.mxu0 %v321
    %325 = vmatpush.msra.mxu0 %v320
    %326 = vmatpush.msra.mxu0 %v319
    %327 = vmatpush.msra.mxu0 %v318
    %328 = vmatpush.msra.mxu0 %v317
    %329 = vmatpush.msra.mxu0 %v316
    %330 = vmatpush.msra.mxu0 %v315
    %331 = vmatpush.msra.mxu0 %v314
    %332 = vmatpush.msra.mxu0 %v313
    %333 = vmatpush.msra.mxu0 %v312
    %334 = vmatpush.msra.mxu0 %v311
    %335 = vmatpush.msra.mxu0 %v310
    %336 = vmatpush.msra.mxu0 %v309
    %337 = vmatpush.msra.mxu0 %v308
    %338 = vmatpush.msra.mxu0 %v307
    %339 = vmatmul.f32.gmra.mxu0 %v305
    %v340 = vpop.f32.mrf.mxu0
    %v341 = vadd.f32 0.0, %v340
    %342 = vdwg.mxu0
    %v343 = vrot.slane %v341, 4
    %v344 = vadd.f32 %v341, %v343
    %v345 = vrot.slane %v344, 2
    %v346 = vadd.f32 %v344, %v345
    %v347 = vrot.slane %v346, 1
    %v348 = vadd.f32 %v346, %v347
    %v349 = vmul.f32 %v348, 0.125
    %v350 = vsub.f32 %v341, %v349
    %v351 = vmul.f32 %v350, %v350
    %v352 = vrot.slane %v351, 4
    %v353 = vadd.f32 %v351, %v352
    %v354 = vrot.slane %v353, 2
    %v355 = vadd.f32 %v353, %v354
    %v356 = vrot.slane %v355, 1
    %v357 = vadd.f32 %v355, %v356
    %v358 = vmul.f32 %v357, 0.125
    %v359 = vadd.f32 %v358, 1e-05
    %v360 = vrsqrt.pop %v359
    %v361 = vmul.f32 %v360, %v359
    %v362 = vmul.f32 %v361, %v360
    %v363 = vmul.f32 0.5, %v362
    %v364 = vsub.f32 1.5, %v363
    %v365 = vmul.f32 %v360, %v364
    %vm366 = vweird.f32 %v359
    %vm367 = vweird.f32 %v360
    %vm368 = vmor %vm366, %vm367
    %v369 = vsel %vm368, %v360, %v365
    %v370 = vmul.f32 %v350, %v369
    %vm371 = vcmp.ge.f32.partialorder %v370, 0.0
    %v372 = vmul.f32 %v370, 0.01
    %v373 = vsel %vm371, %v370, %v372
    %s374 = scalar_lea.vmem [#allocation7], 640
    %v375 = vld [vmem:[%s374] sm:$0xff]
    %v376 = vld [vmem:[%s374 + $0x8] sm:$0xff]
    %v377 = vld [vmem:[%s374 + $0x10] sm:$0xff]
    %v378 = vld [vmem:[%s374 + $0x18] sm:$0xff]
    %v379 = vld [vmem:[%s374 + $0x20] sm:$0xff]
    %v380 = vld [vmem:[%s374 + $0x28] sm:$0xff]
    %v381 = vld [vmem:[%s374 + $0x30] sm:$0xff]
    %v382 = vld [vmem:[%s374 + $0x38] sm:$0xff]
    %v383 = vld [vmem:[%s374 + $0x40] sm:$0xff]
    %v384 = vld [vmem:[%s374 + $0x48] sm:$0xff]
    %v385 = vld [vmem:[%s374 + $0x50] sm:$0xff]
    %v386 = vld [vmem:[%s374 + $0x58] sm:$0xff]
    %v387 = vld [vmem:[%s374 + $0x60] sm:$0xff]
    %v388 = vld [vmem:[%s374 + $0x68] sm:$0xff]
    %v389 = vld [vmem:[%s374 + $0x70] sm:$0xff]
    %v390 = vld [vmem:[%s374 + $0x78] sm:$0xff]
    %v391 = vperm.slane %v61, 1
    %392 = vmatpush.msra.mxu0 %v390
    %393 = vmatpush.msra.mxu0 %v389
    %394 = vmatpush.msra.mxu0 %v388
    %395 = vmatpush.msra.mxu0 %v387
    %396 = vmatpush.msra.mxu0 %v386
    %397 = vmatpush.msra.mxu0 %v385
    %398 = vmatpush.msra.mxu0 %v384
    %399 = vmatpush.msra.mxu0 %v383
    %400 = vmatpush.msra.mxu0 %v382
    %401 = vmatpush.msra.mxu0 %v381
    %402 = vmatpush.msra.mxu0 %v380
    %403 = vmatpush.msra.mxu0 %v379
    %404 = vmatpush.msra.mxu0 %v378
    %405 = vmatpush.msra.mxu0 %v377
    %406 = vmatpush.msra.mxu0 %v376
    %407 = vmatpush.msra.mxu0 %v375
    %408 = vmatmul.f32.gmra.mxu0 %v373
    %v409 = vpop.f32.mrf.mxu0
    %v410 = vadd.f32 %v391, %v409
    %411 = vdwg.mxu0
    %vm412 = vcmp.ge.f32.partialorder %v410, 0.0
    %v413 = vmul.f32 %v410, 0.01
    %v414 = vsel %vm412, %v410, %v413
    %s415 = scalar_lea.vmem [#allocation7], 768
    %v416 = vld [vmem:[%s415] sm:$0xff]
    %v417 = vld [vmem:[%s415 + $0x8] sm:$0xff]
    %v418 = vld [vmem:[%s415 + $0x10] sm:$0xff]
    %v419 = vld [vmem:[%s415 + $0x18] sm:$0xff]
    %v420 = vld [vmem:[%s415 + $0x20] sm:$0xff]
    %v421 = vld [vmem:[%s415 + $0x28] sm:$0xff]
    %v422 = vld [vmem:[%s415 + $0x30] sm:$0xff]
    %v423 = vld [vmem:[%s415 + $0x38] sm:$0xff]
    %v424 = vld [vmem:[%s415 + $0x40] sm:$0xff]
    %v425 = vld [vmem:[%s415 + $0x48] sm:$0xff]
    %v426 = vld [vmem:[%s415 + $0x50] sm:$0xff]
    %v427 = vld [vmem:[%s415 + $0x58] sm:$0xff]
    %v428 = vld [vmem:[%s415 + $0x60] sm:$0xff]
    %v429 = vld [vmem:[%s415 + $0x68] sm:$0xff]
    %v430 = vld [vmem:[%s415 + $0x70] sm:$0xff]
    %v431 = vld [vmem:[%s415 + $0x78] sm:$0xff]
    %432 = vmatpush.msra.mxu0 %v431
    %433 = vmatpush.msra.mxu0 %v430
    %434 = vmatpush.msra.mxu0 %v429
    %435 = vmatpush.msra.mxu0 %v428
    %436 = vmatpush.msra.mxu0 %v427
    %437 = vmatpush.msra.mxu0 %v426
    %438 = vmatpush.msra.mxu0 %v425
    %439 = vmatpush.msra.mxu0 %v424
    %440 = vmatpush.msra.mxu0 %v423
    %441 = vmatpush.msra.mxu0 %v422
    %442 = vmatpush.msra.mxu0 %v421
    %443 = vmatpush.msra.mxu0 %v420
    %444 = vmatpush.msra.mxu0 %v419
    %445 = vmatpush.msra.mxu0 %v418
    %446 = vmatpush.msra.mxu0 %v417
    %447 = vmatpush.msra.mxu0 %v416
    %448 = vmatmul.f32.gmra.mxu0 %v414
    %v449 = vpop.f32.mrf.mxu0
    %v450 = vadd.f32 0.0, %v449
    %451 = vdwg.mxu0
    %v452 = vrot.slane %v450, 4
    %v453 = vadd.f32 %v450, %v452
    %v454 = vrot.slane %v453, 2
    %v455 = vadd.f32 %v453, %v454
    %v456 = vrot.slane %v455, 1
    %v457 = vadd.f32 %v455, %v456
    %v458 = vmul.f32 %v457, 0.125
    %v459 = vsub.f32 %v450, %v458
    %v460 = vmul.f32 %v459, %v459
    %v461 = vrot.slane %v460, 4
    %v462 = vadd.f32 %v460, %v461
    %v463 = vrot.slane %v462, 2
    %v464 = vadd.f32 %v462, %v463
    %v465 = vrot.slane %v464, 1
    %v466 = vadd.f32 %v464, %v465
    %v467 = vmul.f32 %v466, 0.125
    %v468 = vadd.f32 %v467, 1e-05
    %v469 = vrsqrt.pop %v468
    %v470 = vmul.f32 %v469, %v468
    %v471 = vmul.f32 %v470, %v469
    %v472 = vmul.f32 0.5, %v471
    %v473 = vsub.f32 1.5, %v472
    %v474 = vmul.f32 %v469, %v473
    %vm475 = vweird.f32 %v468
    %vm476 = vweird.f32 %v469
    %vm477 = vmor %vm475, %vm476
    %v478 = vsel %vm477, %v469, %v474
    %v479 = vmul.f32 %v459, %v478
    %v480 = vadd.f32 %v479, %v234
    %vm481 = vcmp.ge.f32.partialorder %v480, 0.0
    %v482 = vmul.f32 %v480, 0.01
    %v483 = vsel %vm481, %v480, %v482
    %vm484 = vcmp.ge.f32.partialorder %v483, 0.0
    %v485 = vmul.f32 %v483, 0.01
    %v486 = vsel %vm484, %v483, %v485
    %s487 = scalar_lea.vmem [#allocation7], 896
    %v488 = vld [vmem:[%s487] sm:$0xff]
    %v489 = vld [vmem:[%s487 + $0x8] sm:$0xff]
    %v490 = vld [vmem:[%s487 + $0x10] sm:$0xff]
    %v491 = vld [vmem:[%s487 + $0x18] sm:$0xff]
    %v492 = vld [vmem:[%s487 + $0x20] sm:$0xff]
    %v493 = vld [vmem:[%s487 + $0x28] sm:$0xff]
    %v494 = vld [vmem:[%s487 + $0x30] sm:$0xff]
    %v495 = vld [vmem:[%s487 + $0x38] sm:$0xff]
    %v496 = vld [vmem:[%s487 + $0x40] sm:$0xff]
    %v497 = vld [vmem:[%s487 + $0x48] sm:$0xff]
    %v498 = vld [vmem:[%s487 + $0x50] sm:$0xff]
    %v499 = vld [vmem:[%s487 + $0x58] sm:$0xff]
    %v500 = vld [vmem:[%s487 + $0x60] sm:$0xff]
    %v501 = vld [vmem:[%s487 + $0x68] sm:$0xff]
    %v502 = vld [vmem:[%s487 + $0x70] sm:$0xff]
    %v503 = vld [vmem:[%s487 + $0x78] sm:$0xff]
    %v504 = vperm.slane %v61, 2
    %505 = vmatpush.msra.mxu0 %v503
    %506 = vmatpush.msra.mxu0 %v502
    %507 = vmatpush.msra.mxu0 %v501
    %508 = vmatpush.msra.mxu0 %v500
    %509 = vmatpush.msra.mxu0 %v499
    %510 = vmatpush.msra.mxu0 %v498
    %511 = vmatpush.msra.mxu0 %v497
    %512 = vmatpush.msra.mxu0 %v496
    %513 = vmatpush.msra.mxu0 %v495
    %514 = vmatpush.msra.mxu0 %v494
    %515 = vmatpush.msra.mxu0 %v493
    %516 = vmatpush.msra.mxu0 %v492
    %517 = vmatpush.msra.mxu0 %v491
    %518 = vmatpush.msra.mxu0 %v490
    %519 = vmatpush.msra.mxu0 %v489
    %520 = vmatpush.msra.mxu0 %v488
    %521 = vmatmul.f32.gmra.mxu0 %v486
    %v522 = vpop.f32.mrf.mxu0
    %v523 = vadd.f32 %v504, %v522
    %524 = vdwg.mxu0
    %vm525 = vcmp.ge.f32.partialorder %v523, 0.0
    %v526 = vmul.f32 %v523, 0.01
    %v527 = vsel %vm525, %v523, %v526
    %s528 = scalar_lea.vmem [#allocation7], 1024
    %v529 = vld [vmem:[%s528] sm:$0xff]
    %v530 = vld [vmem:[%s528 + $0x8] sm:$0xff]
    %v531 = vld [vmem:[%s528 + $0x10] sm:$0xff]
    %v532 = vld [vmem:[%s528 + $0x18] sm:$0xff]
    %v533 = vld [vmem:[%s528 + $0x20] sm:$0xff]
    %v534 = vld [vmem:[%s528 + $0x28] sm:$0xff]
    %v535 = vld [vmem:[%s528 + $0x30] sm:$0xff]
    %v536 = vld [vmem:[%s528 + $0x38] sm:$0xff]
    %v537 = vld [vmem:[%s528 + $0x40] sm:$0xff]
    %v538 = vld [vmem:[%s528 + $0x48] sm:$0xff]
    %v539 = vld [vmem:[%s528 + $0x50] sm:$0xff]
    %v540 = vld [vmem:[%s528 + $0x58] sm:$0xff]
    %v541 = vld [vmem:[%s528 + $0x60] sm:$0xff]
    %v542 = vld [vmem:[%s528 + $0x68] sm:$0xff]
    %v543 = vld [vmem:[%s528 + $0x70] sm:$0xff]
    %v544 = vld [vmem:[%s528 + $0x78] sm:$0xff]
    %545 = vmatpush.msra.mxu0 %v544
    %546 = vmatpush.msra.mxu0 %v543
    %547 = vmatpush.msra.mxu0 %v542
    %548 = vmatpush.msra.mxu0 %v541
    %549 = vmatpush.msra.mxu0 %v540
    %550 = vmatpush.msra.mxu0 %v539
    %551 = vmatpush.msra.mxu0 %v538
    %552 = vmatpush.msra.mxu0 %v537
    %553 = vmatpush.msra.mxu0 %v536
    %554 = vmatpush.msra.mxu0 %v535
    %555 = vmatpush.msra.mxu0 %v534
    %556 = vmatpush.msra.mxu0 %v533
    %557 = vmatpush.msra.mxu0 %v532
    %558 = vmatpush.msra.mxu0 %v531
    %559 = vmatpush.msra.mxu0 %v530
    %560 = vmatpush.msra.mxu0 %v529
    %561 = vmatmul.f32.gmra.mxu0 %v527
    %v562 = vpop.f32.mrf.mxu0
    %v563 = vadd.f32 0.0, %v562
    %564 = vdwg.mxu0
    %v565 = vrot.slane %v563, 4
    %v566 = vadd.f32 %v563, %v565
    %v567 = vrot.slane %v566, 2
    %v568 = vadd.f32 %v566, %v567
    %v569 = vrot.slane %v568, 1
    %v570 = vadd.f32 %v568, %v569
    %v571 = vmul.f32 %v570, 0.125
    %v572 = vsub.f32 %v563, %v571
    %v573 = vmul.f32 %v572, %v572
    %v574 = vrot.slane %v573, 4
    %v575 = vadd.f32 %v573, %v574
    %v576 = vrot.slane %v575, 2
    %v577 = vadd.f32 %v575, %v576
    %v578 = vrot.slane %v577, 1
    %v579 = vadd.f32 %v577, %v578
    %v580 = vmul.f32 %v579, 0.125
    %v581 = vadd.f32 %v580, 1e-05
    %v582 = vrsqrt.pop %v581
    %v583 = vmul.f32 %v582, %v581
    %v584 = vmul.f32 %v583, %v582
    %v585 = vmul.f32 0.5, %v584
    %v586 = vsub.f32 1.5, %v585
    %v587 = vmul.f32 %v582, %v586
    %vm588 = vweird.f32 %v581
    %vm589 = vweird.f32 %v582
    %vm590 = vmor %vm588, %vm589
    %v591 = vsel %vm590, %v582, %v587
    %v592 = vmul.f32 %v572, %v591
    %v593 = vadd.f32 %v592, %v97
    %vm594 = vcmp.ge.f32.partialorder %v593, 0.0
    %v595 = vmul.f32 %v593, 0.01
    %v596 = vsel %vm594, %v593, %v595
    %s597 = scalar_lea.vmem [#allocation7], 1152
    %v598 = vld [vmem:[%s597] sm:$0xff]
    %v599 = vld [vmem:[%s597 + $0x8] sm:$0xff]
    %v600 = vld [vmem:[%s597 + $0x10] sm:$0xff]
    %v601 = vld [vmem:[%s597 + $0x18] sm:$0xff]
    %v602 = vld [vmem:[%s597 + $0x20] sm:$0xff]
    %v603 = vld [vmem:[%s597 + $0x28] sm:$0xff]
    %v604 = vld [vmem:[%s597 + $0x30] sm:$0xff]
    %v605 = vld [vmem:[%s597 + $0x38] sm:$0xff]
    %v606 = vld [vmem:[%s597 + $0x40] sm:$0xff]
    %v607 = vld [vmem:[%s597 + $0x48] sm:$0xff]
    %v608 = vld [vmem:[%s597 + $0x50] sm:$0xff]
    %v609 = vld [vmem:[%s597 + $0x58] sm:$0xff]
    %v610 = vld [vmem:[%s597 + $0x60] sm:$0xff]
    %v611 = vld [vmem:[%s597 + $0x68] sm:$0xff]
    %v612 = vld [vmem:[%s597 + $0x70] sm:$0xff]
    %v613 = vld [vmem:[%s597 + $0x78] sm:$0xff]
    %v614 = vperm.slane %v61, 3
    %615 = vmatpush.msra.mxu0 %v613
    %616 = vmatpush.msra.mxu0 %v612
    %617 = vmatpush.msra.mxu0 %v611
    %618 = vmatpush.msra.mxu0 %v610
    %619 = vmatpush.msra.mxu0 %v609
    %620 = vmatpush.msra.mxu0 %v608
    %621 = vmatpush.msra.mxu0 %v607
    %622 = vmatpush.msra.mxu0 %v606
    %623 = vmatpush.msra.mxu0 %v605
    %624 = vmatpush.msra.mxu0 %v604
    %625 = vmatpush.msra.mxu0 %v603
    %626 = vmatpush.msra.mxu0 %v602
    %627 = vmatpush.msra.mxu0 %v601
    %628 = vmatpush.msra.mxu0 %v600
    %629 = vmatpush.msra.mxu0 %v599
    %630 = vmatpush.msra.mxu0 %v598
    %631 = vmatmul.f32.gmra.mxu0 %v596
    %v632 = vpop.f32.mrf.mxu0
    %v633 = vadd.f32 %v614, %v632
    %634 = vdwg.mxu0
    %635 = vst [vmem:[#allocation8] sm:$0xff] %v633
    // Predicated region
    $region26: #{latent_residual_mlp.1} parent=1 // pred_check
      _
    $region27: #{latent_residual_mlp.1} parent=1 // pred_check_branch
      %637 = sbr.rel (0) target = $region29
    $region28: #{latent_residual_mlp.1} parent=1 // pred_region
      %639 = vsyncadd [#allocation4], 0
      %s641 = sshll.u32 [#allocation8], 4
      %s642 = int_to_ptr.vmem [resolvable:$true] %s641
      %s643 = sshll.u32 %s3, 4
      %s644 = int_to_ptr.hbm [resolvable:$true] %s643
      %646 = dma.vmem_to_hbm [thread:$0]  %s642, 128, %s644, [#allocation4]
    $region29: #{latent_residual_mlp.1} parent=1 // pred_fallthru
      _
    // Predicated region
    $region30: #{latent_residual_mlp.1} parent=1 // pred_check
      _
    $region31: #{latent_residual_mlp.1} parent=1 // pred_check_branch
      %648 = sbr.rel (0) target = $region33
    $region32: #{latent_residual_mlp.1} parent=1 // pred_region
      %650 = dma.done [#allocation4], 128
    $region33: #{latent_residual_mlp.1} parent=1 // pred_fallthru
      _
    %651 = vsyncpa [#allocation3], 1
    %652 = vsyncpa [#allocation6], 1
    %653 = vsyncpa [#allocation4], 1

</llo_original>
